<compile_context>
chip_gen: v6e
topology: v6e:2x2x1
jax: 0.10.0
libtpu: 0.0.40
codegen_flags: <defaults>
</compile_context>

<pallas_src>
import functools

import jax
import jax.numpy as jnp
from jax.experimental import pallas as pl
from jax.experimental.pallas import tpu as pltpu


def _round_up(x, m):
    return (x + m - 1) // m * m


def _gelu_exact(x):
    # torch.nn.functional.gelu (erf form), as used by BERT.
    return x * 0.5 * (1.0 + jax.lax.erf(x / jnp.sqrt(2.0).astype(x.dtype)))


# ---------------------------------------------------------------------------
# Kernel
# ---------------------------------------------------------------------------
def bert_lm_token_head_kernel(
    x_ref,      # (tm, H_in)   input row tile (native dtype)
    wd_ref,     # (H_in, H)    dense weight, pre-transposed [in, out]
    bd_ref,     # (1, H)       dense bias
    gamma_ref,  # (1, H)       LayerNorm weight
    beta_ref,   # (1, H)       LayerNorm bias
    wet_ref,    # (H, tn)      decoder weight tile (embedding weights^T)
    bias_ref,   # (1, tn)      decoder bias tile
    o_ref,      # (tm, tn)     output logits tile
    h_ref,      # (tm, H)      VMEM scratch: cached LN'd hidden (decoder dtype)
    *,
    eps,
):
    # Dense + gelu + LayerNorm is computed once per row tile (first vocab
    # tile), cached in VMEM in the decoder compute dtype and reused for every
    # vocab tile.  Requires the vocab grid axis (axis 1) to stay "arbitrary".
    @pl.when(pl.program_id(1) == 0)
    def _():
        h = jnp.dot(x_ref[...], wd_ref[...], preferred_element_type=jnp.float32)
        h = h + bd_ref[...].astype(jnp.float32)
        h = _gelu_exact(h)
        # LayerNorm over hidden (biased variance, like torch nn.LayerNorm).
        mu = jnp.mean(h, axis=-1, keepdims=True)
        d = h - mu
        var = jnp.mean(d * d, axis=-1, keepdims=True)
        h = d * jax.lax.rsqrt(var + eps)
        h = (h * gamma_ref[...].astype(jnp.float32)
             + beta_ref[...].astype(jnp.float32))
        h_ref[...] = h.astype(h_ref.dtype)

    # Decoder: cached hidden @ We^T tile + bias tile (MXU, f32 accumulate).
    logits = jnp.dot(h_ref[...], wet_ref[...],
                     preferred_element_type=jnp.float32)
    logits = logits + bias_ref[...].astype(jnp.float32)
    o_ref[...] = logits.astype(o_ref.dtype)


# ---------------------------------------------------------------------------
# One-time parameter layout preparation (do this at checkpoint-load time).
# ---------------------------------------------------------------------------
def prepare_bert_lm_head_params(params):
    """Pre-transpose / reshape params once (NOT per forward call).

    Input (torch layout): dense_w [H, H_in], dense_b [H], ln_gamma [H],
    ln_beta [H], decoder_w [V, H] (tied embedding weights), decoder_b [V].
    The We transpose is a full HBM pass over a potentially 60-120 MiB weight,
    so it belongs with parameter loading, not the hot path.
    """
    return {
        "dense_w_t": jnp.asarray(params["dense_w"]).T,       # [H_in, H]
        "dense_b": jnp.asarray(params["dense_b"]).reshape(1, -1),
        "ln_gamma": jnp.asarray(params["ln_gamma"]).reshape(1, -1),
        "ln_beta": jnp.asarray(params["ln_beta"]).reshape(1, -1),
        "decoder_w_t": jnp.asarray(params["decoder_w"]).T,   # [H, V]
        "decoder_b": jnp.asarray(params["decoder_b"]).reshape(1, -1),
    }


# ---------------------------------------------------------------------------
# Per-generation defaults (tm, tn, vmem budget, row-parallel TensorCores).
# ---------------------------------------------------------------------------
def _device_config(weight_itemsize):
    kind = ""
    try:
        kind = jax.devices()[0].device_kind.lower()
    except Exception:  # defensive: keep generic defaults
        pass
    if "v7" in kind or "7x" in kind:
        # v7x: 64 MiB VMEM per TC, 2 TCs -> cap the budget and make sure the
        # "parallel" row axis gets >= 2 tiles so both TensorCores have work.
        return dict(tm=512, tn=2048, vmem_limit_bytes=56 * 1024 * 1024,
                    row_parallel_cores=2)
    if "v6" in kind:
        tn = 4096 if weight_itemsize <= 2 else 2048
        return dict(tm=512, tn=tn, vmem_limit_bytes=100 * 1024 * 1024,
                    row_parallel_cores=1)
    if "v5 lite" in kind or "v5e" in kind or "v5lite" in kind:
        return dict(tm=512, tn=2048, vmem_limit_bytes=96 * 1024 * 1024,
                    row_parallel_cores=1)
    # Unknown generation: conservative defaults that fit any VMEM size.
    return dict(tm=512, tn=2048, vmem_limit_bytes=48 * 1024 * 1024,
                row_parallel_cores=1)


def _const_spec(shape, single_buffer):
    """BlockSpec for an operand whose block index never changes."""
    index_map = lambda i, j: (0,) * len(shape)
    if single_buffer:
        # Constant block index -> double buffering is pure VMEM waste.
        return pl.BlockSpec(shape, index_map, pipeline_mode=pl.Buffered(1))
    return pl.BlockSpec(shape, index_map)


# ---------------------------------------------------------------------------
# Wrapper
# ---------------------------------------------------------------------------
def bert_lm_token_head(x, prepared_params, *, eps=1e-12, tm=None, tn=None,
                       vmem_limit_bytes=None, out_dtype=None):
    """x: [batch, seq, H_in] -> logits [batch, seq, V]."""
    B, S, H_in = x.shape
    wd_t = prepared_params["dense_w_t"]       # [H_in, H]
    bd2 = prepared_params["dense_b"]          # [1, H]
    gamma2 = prepared_params["ln_gamma"]      # [1, H]
    beta2 = prepared_params["ln_beta"]        # [1, H]
    we_t = prepared_params["decoder_w_t"]     # [H, V]
    bias2 = prepared_params["decoder_b"]      # [1, V]
    assert wd_t.shape[0] == H_in
    H = wd_t.shape[1]
    V = we_t.shape[1]
    out_dtype = x.dtype if out_dtype is None else out_dtype

    cfg = _device_config(jnp.dtype(we_t.dtype).itemsize)
    tm = cfg["tm"] if tm is None else tm
    tn = cfg["tn"] if tn is None else tn
    vmem_limit_bytes = (cfg["vmem_limit_bytes"] if vmem_limit_bytes is None
                        else vmem_limit_bytes)

    N = B * S
    x2 = x.reshape(N, H_in)   # free reshape, no copy

    # Row tiles multiple of 8, vocab tiles multiple of 128 (lane-dense output).
    tm_eff = max(8, min(tm, _round_up(N, 8)))
    tn_eff = max(128, min(tn, _round_up(V, 128)))

    # v7x megacore: shrink the row tile (down to 128) until both TensorCores
    # get at least one tile on the "parallel" row axis.
    while (cfg["row_parallel_cores"] > 1 and tm_eff > 128
           and pl.cdiv(N, tm_eff) < cfg["row_parallel_cores"]):
        tm_eff = max(128, _round_up(tm_eff // 2, 8))

    # No padding anywhere: partial last blocks are handled by Pallas (the
    # out-of-bounds rows/columns feed only out-of-bounds output elements,
    # which are never written back).
    grid = (pl.cdiv(N, tm_eff), pl.cdiv(V, tn_eff))

    def call(single_buffer_consts):
        return pl.pallas_call(
            functools.partial(bert_lm_token_head_kernel, eps=eps),
            out_shape=jax.ShapeDtypeStruct((N, V), out_dtype),
            grid_spec=pltpu.PrefetchScalarGridSpec(
                num_scalar_prefetch=0,
                grid=grid,
                in_specs=[
                    pl.BlockSpec((tm_eff, H_in), lambda i, j: (i, 0)),
                    _const_spec((H_in, H), single_buffer_consts),
                    _const_spec((1, H), single_buffer_consts),
                    _const_spec((1, H), single_buffer_consts),
                    _const_spec((1, H), single_buffer_consts),
                    # TODO(synk): sweep pipeline_mode=pl.Buffered(3) on the
                    # streamed We/bias tiles if a trace shows exposed DMA
                    # between vocab tiles (mainly with f32 weights).
                    pl.BlockSpec((H, tn_eff), lambda i, j: (0, j)),
                    pl.BlockSpec((1, tn_eff), lambda i, j: (0, j)),
                ],
                out_specs=pl.BlockSpec((tm_eff, tn_eff), lambda i, j: (i, j)),
                # Cached hidden lives in the decoder compute dtype: no per-
                # vocab-tile cast and half the scratch for bf16 weights.
                scratch_shapes=[pltpu.VMEM((tm_eff, H), we_t.dtype)],
            ),
            compiler_params=pltpu.CompilerParams(
                # Axis 1 (vocab) MUST stay "arbitrary": the pl.when(j == 0)
                # hidden cache relies on sequential execution per row tile.
                dimension_semantics=("parallel", "arbitrary"),
                vmem_limit_bytes=vmem_limit_bytes),
        )(x2, wd_t, bd2, gamma2, beta2, we_t, bias2)

    try:
        out = call(True)
    except Exception:
        # TODO(synk): jax version without pl.Buffered(1) single-buffering
        # support; fall back to default double-buffered constant operands.
        out = call(False)

    return out.reshape(B, S, V)


# ---------------------------------------------------------------------------
# Reference + demo
# ---------------------------------------------------------------------------
def _reference(x, params, eps=1e-12):
    wd, bd = params["dense_w"], params["dense_b"]
    gamma, beta = params["ln_gamma"], params["ln_beta"]
    we, bias = params["decoder_w"], params["decoder_b"]
    h = x @ wd.T + bd
    h = _gelu_exact(h)
    mu = h.mean(-1, keepdims=True)
    var = ((h - mu) ** 2).mean(-1, keepdims=True)
    h = (h - mu) / jnp.sqrt(var + eps)
    h = h * gamma + beta
    return h @ we.T + bias


def _make_params(key, H_in, H, V):
    k_wd, k_bd, k_we, k_g, k_b = jax.random.split(key, 5)
    return {
        "dense_w": 0.05 * jax.random.normal(k_wd, (H, H_in), dtype=jnp.float32),
        "dense_b": 0.01 * jax.random.normal(k_bd, (H,), dtype=jnp.float32),
        "ln_gamma": 1.0 + 0.1 * jax.random.normal(k_g, (H,), dtype=jnp.float32),
        "ln_beta": 0.1 * jax.random.normal(k_b, (H,), dtype=jnp.float32),
        # bert_model_embedding_weights: [vocab, hidden]
        "decoder_w": 0.05 * jax.random.normal(k_we, (V, H), dtype=jnp.float32),
        # self.bias is initialized to zeros in the module
        "decoder_b": jnp.zeros((V,), dtype=jnp.float32),
    }


if __name__ == "__main__":
    key = jax.random.PRNGKey(0)
    k1, k2, kp1, kp2 = jax.random.split(key, 4)

    # Test 1: shapes implied by the module (batch=2, seq=8, hidden=32,
    # vocab=128); auto per-generation tiles clamped down to the tiny shapes.
    B, S, H_in, H, V = 2, 8, 32, 32, 128
    x = jax.random.normal(k1, (B, S, H_in), dtype=jnp.float32)
    params = _make_params(kp1, H_in, H, V)
    prepared = prepare_bert_lm_head_params(params)   # one-time layout prep
    out = jax.block_until_ready(bert_lm_token_head(x, prepared))
    ref = _reference(x, params)
    assert out.shape == (B, S, V)
    assert jnp.allclose(out, ref, atol=1e-4, rtol=1e-4), (
        float(jnp.max(jnp.abs(out - ref))))

    # Test 2: ragged shapes + small tiles exercising partial row/vocab blocks,
    # a multi-step grid and the cached-hidden (pl.when) path.  No padding is
    # materialized: Pallas handles the partial last blocks directly.
    B2, S2, V2 = 2, 7, 200
    x_b = jax.random.normal(k2, (B2, S2, H_in), dtype=jnp.float32)
    params_b = _make_params(kp2, H_in, H, V2)
    prepared_b = prepare_bert_lm_head_params(params_b)
    out_b = jax.block_until_ready(
        bert_lm_token_head(x_b, prepared_b, tm=8, tn=128))
    ref_b = _reference(x_b, params_b)
    assert out_b.shape == (B2, S2, V2)
    assert jnp.allclose(out_b, ref_b, atol=1e-4, rtol=1e-4), (
        float(jnp.max(jnp.abs(out_b - ref_b))))

    # Test 3: optional bf16 logits output (halves the N x V output stream).
    out_bf16 = jax.block_until_ready(
        bert_lm_token_head(x, prepared, out_dtype=jnp.bfloat16))
    assert out_bf16.dtype == jnp.bfloat16
    assert jnp.allclose(out_bf16.astype(jnp.float32), ref, atol=5e-2), (
        float(jnp.max(jnp.abs(out_bf16.astype(jnp.float32) - ref))))

    print("KERNEL_OK")
</pallas_src>

<mosaic_0001>
module attributes {stable_mosaic.version = 11 : i64} {
  func.func @bert_lm_token_head_kernel(%arg0: i32, %arg1: i32, %arg2: memref<16x32xf32, #tpu.memory_space<vmem>>, %arg3: memref<32x32xf32, #tpu.memory_space<vmem>>, %arg4: memref<1x32xf32, #tpu.memory_space<vmem>>, %arg5: memref<1x32xf32, #tpu.memory_space<vmem>>, %arg6: memref<1x32xf32, #tpu.memory_space<vmem>>, %arg7: memref<32x128xf32, #tpu.memory_space<vmem>>, %arg8: memref<1x128xf32, #tpu.memory_space<vmem>>, %arg9: memref<16x128xf32, #tpu.memory_space<vmem>>, %arg10: memref<16x32xf32, #tpu.memory_space<vmem>>) attributes {dimension_semantics = [#tpu.dimension_semantics<parallel>, #tpu.dimension_semantics<arbitrary>], iteration_bounds = array<i64: 1, 1>, scalar_prefetch = 0 : i64, scratch_operands = 1 : i64, tpu.core_type = #tpu.core_type<tc>, window_params = [{transform_indices = @transform_0, window_bounds = array<i64: 16, 32>}, {pipeline_mode = #tpu.pipeline_mode<synchronous>, transform_indices = @transform_1, window_bounds = array<i64: 32, 32>}, {pipeline_mode = #tpu.pipeline_mode<synchronous>, transform_indices = @transform_2, window_bounds = array<i64: 1, 32>}, {pipeline_mode = #tpu.pipeline_mode<synchronous>, transform_indices = @transform_3, window_bounds = array<i64: 1, 32>}, {pipeline_mode = #tpu.pipeline_mode<synchronous>, transform_indices = @transform_4, window_bounds = array<i64: 1, 32>}, {transform_indices = @transform_5, window_bounds = array<i64: 32, 128>}, {transform_indices = @transform_6, window_bounds = array<i64: 1, 128>}, {transform_indices = @transform_7, window_bounds = array<i64: 16, 128>}]} {
    %c0_i32 = arith.constant 0 : i32
    %0 = arith.cmpi eq, %arg1, %c0_i32 : i32
    %1 = arith.extui %0 : i1 to i32
    %c0_i32_0 = arith.constant 0 : i32
    %2 = arith.cmpi ne, %1, %c0_i32_0 : i32
    scf.if %2 {
      %c0_8 = arith.constant 0 : index
      %c0_9 = arith.constant 0 : index
      %10 = vector.load %arg2[%c0_8, %c0_9] : memref<16x32xf32, #tpu.memory_space<vmem>>, vector<16x32xf32>
      %c0_10 = arith.constant 0 : index
      %c0_11 = arith.constant 0 : index
      %11 = vector.load %arg3[%c0_10, %c0_11] : memref<32x32xf32, #tpu.memory_space<vmem>>, vector<32x32xf32>
      %cst_12 = arith.constant dense<0.000000e+00> : vector<16x32xf32>
      %12 = tpu.matmul %10, %11, %cst_12 {dimension_numbers = #tpu.dot_dimension_numbers<[1], [0], [0], [1], [0, 0, 1, 1], [], []>} : vector<16x32xf32>, vector<32x32xf32>, vector<16x32xf32> -> vector<16x32xf32>
      %c0_13 = arith.constant 0 : index
      %c0_14 = arith.constant 0 : index
      %13 = vector.load %arg4[%c0_13, %c0_14] : memref<1x32xf32, #tpu.memory_space<vmem>>, vector<1x32xf32>
      %14 = vector.broadcast %13 : vector<1x32xf32> to vector<16x32xf32>
      %15 = arith.addf %12, %14 : vector<16x32xf32>
      %cst_15 = arith.constant 5.000000e-01 : f32
      %16 = vector.broadcast %cst_15 : f32 to vector<16x32xf32>
      %17 = arith.mulf %15, %16 : vector<16x32xf32>
      %cst_16 = arith.constant 2.000000e+00 : f32
      %18 = math.sqrt %cst_16 : f32
      %19 = vector.broadcast %18 : f32 to vector<16x32xf32>
      %20 = arith.divf %15, %19 : vector<16x32xf32>
      %21 = math.erf %20 : vector<16x32xf32>
      %cst_17 = arith.constant 1.000000e+00 : f32
      %22 = vector.broadcast %cst_17 : f32 to vector<16x32xf32>
      %23 = arith.addf %22, %21 : vector<16x32xf32>
      %24 = arith.mulf %17, %23 : vector<16x32xf32>
      %cst_18 = arith.constant dense<0.000000e+00> : vector<16xf32>
      %25 = vector.multi_reduction <add>, %24, %cst_18 [1] : vector<16x32xf32> to vector<16xf32>
      %26 = vector.shape_cast %25 : vector<16xf32> to vector<16x1xf32>
      %cst_19 = arith.constant 3.200000e+01 : f32
      %27 = vector.broadcast %cst_19 : f32 to vector<16x1xf32>
      %28 = arith.divf %26, %27 : vector<16x1xf32>
      %29 = vector.broadcast %28 : vector<16x1xf32> to vector<16x32xf32>
      %30 = arith.subf %24, %29 : vector<16x32xf32>
      %31 = arith.mulf %30, %30 : vector<16x32xf32>
      %cst_20 = arith.constant dense<0.000000e+00> : vector<16xf32>
      %32 = vector.multi_reduction <add>, %31, %cst_20 [1] : vector<16x32xf32> to vector<16xf32>
      %33 = vector.shape_cast %32 : vector<16xf32> to vector<16x1xf32>
      %cst_21 = arith.constant 3.200000e+01 : f32
      %34 = vector.broadcast %cst_21 : f32 to vector<16x1xf32>
      %35 = arith.divf %33, %34 : vector<16x1xf32>
      %cst_22 = arith.constant 9.99999996E-13 : f32
      %36 = vector.broadcast %cst_22 : f32 to vector<16x1xf32>
      %37 = arith.addf %35, %36 : vector<16x1xf32>
      %38 = math.rsqrt %37 : vector<16x1xf32>
      %39 = vector.broadcast %38 : vector<16x1xf32> to vector<16x32xf32>
      %40 = arith.mulf %30, %39 : vector<16x32xf32>
      %c0_23 = arith.constant 0 : index
      %c0_24 = arith.constant 0 : index
      %41 = vector.load %arg5[%c0_23, %c0_24] : memref<1x32xf32, #tpu.memory_space<vmem>>, vector<1x32xf32>
      %42 = vector.broadcast %41 : vector<1x32xf32> to vector<16x32xf32>
      %43 = arith.mulf %40, %42 : vector<16x32xf32>
      %c0_25 = arith.constant 0 : index
      %c0_26 = arith.constant 0 : index
      %44 = vector.load %arg6[%c0_25, %c0_26] : memref<1x32xf32, #tpu.memory_space<vmem>>, vector<1x32xf32>
      %45 = vector.broadcast %44 : vector<1x32xf32> to vector<16x32xf32>
      %46 = arith.addf %43, %45 : vector<16x32xf32>
      %c0_27 = arith.constant 0 : index
      %c0_28 = arith.constant 0 : index
      %47 = vector.load %arg10[%c0_27, %c0_28] : memref<16x32xf32, #tpu.memory_space<vmem>>, vector<16x32xf32>
      tpu.vector_store %arg10[%c0_27, %c0_28], %46 {strides = array<i32>} : memref<16x32xf32, #tpu.memory_space<vmem>>, vector<16x32xf32>,
    } else {
    }
    %c0 = arith.constant 0 : index
    %c0_1 = arith.constant 0 : index
    %3 = vector.load %arg10[%c0, %c0_1] : memref<16x32xf32, #tpu.memory_space<vmem>>, vector<16x32xf32>
    %c0_2 = arith.constant 0 : index
    %c0_3 = arith.constant 0 : index
    %4 = vector.load %arg7[%c0_2, %c0_3] : memref<32x128xf32, #tpu.memory_space<vmem>>, vector<32x128xf32>
    %cst = arith.constant dense<0.000000e+00> : vector<16x128xf32>
    %5 = tpu.matmul %3, %4, %cst {dimension_numbers = #tpu.dot_dimension_numbers<[1], [0], [0], [1], [0, 0, 1, 1], [], []>} : vector<16x32xf32>, vector<32x128xf32>, vector<16x128xf32> -> vector<16x128xf32>
    %c0_4 = arith.constant 0 : index
    %c0_5 = arith.constant 0 : index
    %6 = vector.load %arg8[%c0_4, %c0_5] : memref<1x128xf32, #tpu.memory_space<vmem>>, vector<1x128xf32>
    %7 = vector.broadcast %6 : vector<1x128xf32> to vector<16x128xf32>
    %8 = arith.addf %5, %7 : vector<16x128xf32>
    %c0_6 = arith.constant 0 : index
    %c0_7 = arith.constant 0 : index
    %9 = vector.load %arg9[%c0_6, %c0_7] : memref<16x128xf32, #tpu.memory_space<vmem>>, vector<16x128xf32>
    tpu.vector_store %arg9[%c0_6, %c0_7], %8 {strides = array<i32>} : memref<16x128xf32, #tpu.memory_space<vmem>>, vector<16x128xf32>,
    return
  }
  func.func @transform_0(%arg0: i32, %arg1: i32) -> (i32, i32) {
    %c0_i32 = arith.constant 0 : i32
    %c0_i32_0 = arith.constant 0 : i32
    return %arg0, %c0_i32 : i32, i32
  }
  func.func @transform_1(%arg0: i32, %arg1: i32) -> (i32, i32) {
    %c0_i32 = arith.constant 0 : i32
    %c0_i32_0 = arith.constant 0 : i32
    %c0_i32_1 = arith.constant 0 : i32
    return %c0_i32, %c0_i32_0 : i32, i32
  }
  func.func @transform_2(%arg0: i32, %arg1: i32) -> (i32, i32) {
    %c0_i32 = arith.constant 0 : i32
    %c0_i32_0 = arith.constant 0 : i32
    %c0_i32_1 = arith.constant 0 : i32
    return %c0_i32, %c0_i32_0 : i32, i32
  }
  func.func @transform_3(%arg0: i32, %arg1: i32) -> (i32, i32) {
    %c0_i32 = arith.constant 0 : i32
    %c0_i32_0 = arith.constant 0 : i32
    %c0_i32_1 = arith.constant 0 : i32
    return %c0_i32, %c0_i32_0 : i32, i32
  }
  func.func @transform_4(%arg0: i32, %arg1: i32) -> (i32, i32) {
    %c0_i32 = arith.constant 0 : i32
    %c0_i32_0 = arith.constant 0 : i32
    %c0_i32_1 = arith.constant 0 : i32
    return %c0_i32, %c0_i32_0 : i32, i32
  }
  func.func @transform_5(%arg0: i32, %arg1: i32) -> (i32, i32) {
    %c0_i32 = arith.constant 0 : i32
    %c0_i32_0 = arith.constant 0 : i32
    return %c0_i32, %arg1 : i32, i32
  }
  func.func @transform_6(%arg0: i32, %arg1: i32) -> (i32, i32) {
    %c0_i32 = arith.constant 0 : i32
    %c0_i32_0 = arith.constant 0 : i32
    return %c0_i32, %arg1 : i32, i32
  }
  func.func @transform_7(%arg0: i32, %arg1: i32) -> (i32, i32) {
    %c0_i32 = arith.constant 0 : i32
    return %arg0, %arg1 : i32, i32
  }
}

module attributes {stable_mosaic.version = 11 : i64} {
  func.func @bert_lm_token_head_kernel(%arg0: i32, %arg1: i32, %arg2: memref<16x32xf32, #tpu.memory_space<vmem>>, %arg3: memref<32x32xf32, #tpu.memory_space<vmem>>, %arg4: memref<1x32xf32, #tpu.memory_space<vmem>>, %arg5: memref<1x32xf32, #tpu.memory_space<vmem>>, %arg6: memref<1x32xf32, #tpu.memory_space<vmem>>, %arg7: memref<32x128xf32, #tpu.memory_space<vmem>>, %arg8: memref<1x128xf32, #tpu.memory_space<vmem>>, %arg9: memref<16x128xf32, #tpu.memory_space<vmem>>, %arg10: memref<16x32xf32, #tpu.memory_space<vmem>>) attributes {dimension_semantics = [#tpu.dimension_semantics<parallel>, #tpu.dimension_semantics<arbitrary>], iteration_bounds = array<i64: 1, 1>, scalar_prefetch = 0 : i64, scratch_operands = 1 : i64, tpu.core_type = #tpu.core_type<tc>, window_params = [{transform_indices = @transform_0, window_bounds = array<i64: 16, 32>}, {pipeline_mode = #tpu.pipeline_mode<synchronous>, transform_indices = @transform_1, window_bounds = array<i64: 32, 32>}, {pipeline_mode = #tpu.pipeline_mode<synchronous>, transform_indices = @transform_2, window_bounds = array<i64: 1, 32>}, {pipeline_mode = #tpu.pipeline_mode<synchronous>, transform_indices = @transform_3, window_bounds = array<i64: 1, 32>}, {pipeline_mode = #tpu.pipeline_mode<synchronous>, transform_indices = @transform_4, window_bounds = array<i64: 1, 32>}, {transform_indices = @transform_5, window_bounds = array<i64: 32, 128>}, {transform_indices = @transform_6, window_bounds = array<i64: 1, 128>}, {transform_indices = @transform_7, window_bounds = array<i64: 16, 128>}]} {
    %c0_i32 = arith.constant 0 : i32
    %0 = arith.cmpi eq, %arg1, %c0_i32 : i32
    %1 = arith.extui %0 : i1 to i32
    %c0_i32_0 = arith.constant 0 : i32
    %2 = arith.cmpi ne, %1, %c0_i32_0 : i32
    scf.if %2 {
      %c0_8 = arith.constant 0 : index
      %c0_9 = arith.constant 0 : index
      %10 = vector.load %arg2[%c0_8, %c0_9] : memref<16x32xf32, #tpu.memory_space<vmem>>, vector<16x32xf32>
      %c0_10 = arith.constant 0 : index
      %c0_11 = arith.constant 0 : index
      %11 = vector.load %arg3[%c0_10, %c0_11] : memref<32x32xf32, #tpu.memory_space<vmem>>, vector<32x32xf32>
      %cst_12 = arith.constant dense<0.000000e+00> : vector<16x32xf32>
      %12 = tpu.matmul %10, %11, %cst_12 {dimension_numbers = #tpu.dot_dimension_numbers<[1], [0], [0], [1], [0, 0, 1, 1], [], []>} : vector<16x32xf32>, vector<32x32xf32>, vector<16x32xf32> -> vector<16x32xf32>
      %c0_13 = arith.constant 0 : index
      %c0_14 = arith.constant 0 : index
      %13 = vector.load %arg4[%c0_13, %c0_14] : memref<1x32xf32, #tpu.memory_space<vmem>>, vector<1x32xf32>
      %14 = vector.broadcast %13 : vector<1x32xf32> to vector<16x32xf32>
      %15 = arith.addf %12, %14 : vector<16x32xf32>
      %cst_15 = arith.constant 5.000000e-01 : f32
      %16 = vector.broadcast %cst_15 : f32 to vector<16x32xf32>
      %17 = arith.mulf %15, %16 : vector<16x32xf32>
      %cst_16 = arith.constant 2.000000e+00 : f32
      %18 = math.sqrt %cst_16 : f32
      %19 = vector.broadcast %18 : f32 to vector<16x32xf32>
      %20 = arith.divf %15, %19 : vector<16x32xf32>
      %21 = math.erf %20 : vector<16x32xf32>
      %cst_17 = arith.constant 1.000000e+00 : f32
      %22 = vector.broadcast %cst_17 : f32 to vector<16x32xf32>
      %23 = arith.addf %22, %21 : vector<16x32xf32>
      %24 = arith.mulf %17, %23 : vector<16x32xf32>
      %cst_18 = arith.constant dense<0.000000e+00> : vector<16xf32>
      %25 = vector.multi_reduction <add>, %24, %cst_18 [1] : vector<16x32xf32> to vector<16xf32>
      %26 = vector.shape_cast %25 : vector<16xf32> to vector<16x1xf32>
      %cst_19 = arith.constant 3.200000e+01 : f32
      %27 = vector.broadcast %cst_19 : f32 to vector<16x1xf32>
      %28 = arith.divf %26, %27 : vector<16x1xf32>
      %29 = vector.broadcast %28 : vector<16x1xf32> to vector<16x32xf32>
      %30 = arith.subf %24, %29 : vector<16x32xf32>
      %31 = arith.mulf %30, %30 : vector<16x32xf32>
      %cst_20 = arith.constant dense<0.000000e+00> : vector<16xf32>
      %32 = vector.multi_reduction <add>, %31, %cst_20 [1] : vector<16x32xf32> to vector<16xf32>
      %33 = vector.shape_cast %32 : vector<16xf32> to vector<16x1xf32>
      %cst_21 = arith.constant 3.200000e+01 : f32
      %34 = vector.broadcast %cst_21 : f32 to vector<16x1xf32>
      %35 = arith.divf %33, %34 : vector<16x1xf32>
      %cst_22 = arith.constant 9.99999996E-13 : f32
      %36 = vector.broadcast %cst_22 : f32 to vector<16x1xf32>
      %37 = arith.addf %35, %36 : vector<16x1xf32>
      %38 = math.rsqrt %37 : vector<16x1xf32>
      %39 = vector.broadcast %38 : vector<16x1xf32> to vector<16x32xf32>
      %40 = arith.mulf %30, %39 : vector<16x32xf32>
      %c0_23 = arith.constant 0 : index
      %c0_24 = arith.constant 0 : index
      %41 = vector.load %arg5[%c0_23, %c0_24] : memref<1x32xf32, #tpu.memory_space<vmem>>, vector<1x32xf32>
      %42 = vector.broadcast %41 : vector<1x32xf32> to vector<16x32xf32>
      %43 = arith.mulf %40, %42 : vector<16x32xf32>
      %c0_25 = arith.constant 0 : index
      %c0_26 = arith.constant 0 : index
      %44 = vector.load %arg6[%c0_25, %c0_26] : memref<1x32xf32, #tpu.memory_space<vmem>>, vector<1x32xf32>
      %45 = vector.broadcast %44 : vector<1x32xf32> to vector<16x32xf32>
      %46 = arith.addf %43, %45 : vector<16x32xf32>
      %c0_27 = arith.constant 0 : index
      %c0_28 = arith.constant 0 : index
      %47 = vector.load %arg10[%c0_27, %c0_28] : memref<16x32xf32, #tpu.memory_space<vmem>>, vector<16x32xf32>
      tpu.vector_store %arg10[%c0_27, %c0_28], %46 {strides = array<i32>} : memref<16x32xf32, #tpu.memory_space<vmem>>, vector<16x32xf32>,
    } else {
    }
    %c0 = arith.constant 0 : index
    %c0_1 = arith.constant 0 : index
    %3 = vector.load %arg10[%c0, %c0_1] : memref<16x32xf32, #tpu.memory_space<vmem>>, vector<16x32xf32>
    %c0_2 = arith.constant 0 : index
    %c0_3 = arith.constant 0 : index
    %4 = vector.load %arg7[%c0_2, %c0_3] : memref<32x128xf32, #tpu.memory_space<vmem>>, vector<32x128xf32>
    %cst = arith.constant dense<0.000000e+00> : vector<16x128xf32>
    %5 = tpu.matmul %3, %4, %cst {dimension_numbers = #tpu.dot_dimension_numbers<[1], [0], [0], [1], [0, 0, 1, 1], [], []>} : vector<16x32xf32>, vector<32x128xf32>, vector<16x128xf32> -> vector<16x128xf32>
    %c0_4 = arith.constant 0 : index
    %c0_5 = arith.constant 0 : index
    %6 = vector.load %arg8[%c0_4, %c0_5] : memref<1x128xf32, #tpu.memory_space<vmem>>, vector<1x128xf32>
    %7 = vector.broadcast %6 : vector<1x128xf32> to vector<16x128xf32>
    %8 = arith.addf %5, %7 : vector<16x128xf32>
    %c0_6 = arith.constant 0 : index
    %c0_7 = arith.constant 0 : index
    %9 = vector.load %arg9[%c0_6, %c0_7] : memref<16x128xf32, #tpu.memory_space<vmem>>, vector<16x128xf32>
    tpu.vector_store %arg9[%c0_6, %c0_7], %8 {strides = array<i32>} : memref<16x128xf32, #tpu.memory_space<vmem>>, vector<16x128xf32>,
    return
  }
  func.func @transform_0(%arg0: i32, %arg1: i32) -> (i32, i32) {
    %c0_i32 = arith.constant 0 : i32
    %c0_i32_0 = arith.constant 0 : i32
    return %arg0, %c0_i32 : i32, i32
  }
  func.func @transform_1(%arg0: i32, %arg1: i32) -> (i32, i32) {
    %c0_i32 = arith.constant 0 : i32
    %c0_i32_0 = arith.constant 0 : i32
    %c0_i32_1 = arith.constant 0 : i32
    return %c0_i32, %c0_i32_0 : i32, i32
  }
  func.func @transform_2(%arg0: i32, %arg1: i32) -> (i32, i32) {
    %c0_i32 = arith.constant 0 : i32
    %c0_i32_0 = arith.constant 0 : i32
    %c0_i32_1 = arith.constant 0 : i32
    return %c0_i32, %c0_i32_0 : i32, i32
  }
  func.func @transform_3(%arg0: i32, %arg1: i32) -> (i32, i32) {
    %c0_i32 = arith.constant 0 : i32
    %c0_i32_0 = arith.constant 0 : i32
    %c0_i32_1 = arith.constant 0 : i32
    return %c0_i32, %c0_i32_0 : i32, i32
  }
  func.func @transform_4(%arg0: i32, %arg1: i32) -> (i32, i32) {
    %c0_i32 = arith.constant 0 : i32
    %c0_i32_0 = arith.constant 0 : i32
    %c0_i32_1 = arith.constant 0 : i32
    return %c0_i32, %c0_i32_0 : i32, i32
  }
  func.func @transform_5(%arg0: i32, %arg1: i32) -> (i32, i32) {
    %c0_i32 = arith.constant 0 : i32
    %c0_i32_0 = arith.constant 0 : i32
    return %c0_i32, %arg1 : i32, i32
  }
  func.func @transform_6(%arg0: i32, %arg1: i32) -> (i32, i32) {
    %c0_i32 = arith.constant 0 : i32
    %c0_i32_0 = arith.constant 0 : i32
    return %c0_i32, %arg1 : i32, i32
  }
  func.func @transform_7(%arg0: i32, %arg1: i32) -> (i32, i32) {
    %c0_i32 = arith.constant 0 : i32
    return %arg0, %arg1 : i32, i32
  }
}

</mosaic_0001>

<llo_original>
// kernel: tpu_custom_call.1
$region0: #{tpu_custom_call.1}
  #allocation0 [shape = 'u32[]', space=smem, size = 0x4, offset = 0x4, fixed_abs, tag = 'smem constant byte address 0x4 - core index']
  #allocation1 [shape = 'u32[144,128]{1,0:T(1,128)}', space=vmem, size = 0x12000, scoped, tag = 'internal scratch']
  #allocation2 [shape = 'f32[16,32]{1,0:T(8,128)}', space=vmem, size = 0x2000, scoped, tag = 'scratch operand']
  %s0 = inlined_call_operand.hbm [shape: f32[16,32], index: 0, kind: input, shape index: {}]
  %s1 = inlined_call_operand.hbm [shape: f32[32,32], index: 1, kind: input, shape index: {}]
  %s2 = inlined_call_operand.vmem [shape: f32[1,32], index: 2, kind: input, shape index: {}]
  %s3 = inlined_call_operand.vmem [shape: f32[1,32], index: 3, kind: input, shape index: {}]
  %s4 = inlined_call_operand.vmem [shape: f32[1,32], index: 4, kind: input, shape index: {}]
  %s5 = inlined_call_operand.hbm [shape: f32[32,128], index: 5, kind: input, shape index: {}]
  %s6 = inlined_call_operand.vmem [shape: f32[1,128], index: 6, kind: input, shape index: {}]
  %s7 = inlined_call_operand.hbm [shape: f32[16,128], index: 7, kind: output, shape index: {}]
  %s8 = sld [smem:[#allocation0]]
  $region54: #{tpu_custom_call.1} parent=0
    _
  %s10 = ssub.s32 1, %s8
  %s11 = scalar_select 0, %s10, %s8
  $region1: #{tpu_custom_call.1} parent=0
    #allocation3 [shape = 'u8[8192]{0}', space=vmem, size = 0x2000, scoped, tag = 'input window, operand 0, single buffered']
    #allocation4 [shape = 's32[1]{0}', space=sflag, size = 0x4, scoped, tag = 'scoped memory for tpu_custom_call.1']
    #allocation5 [shape = 's32[1]{0}', space=sflag, size = 0x4, scoped, tag = 'scoped memory for tpu_custom_call.1']
    #allocation6 [shape = 'u8[16384]{0}', space=vmem, size = 0x4000, scoped, tag = 'input window, operand 1, single buffered']
    #allocation7 [shape = 's32[1]{0}', space=sflag, size = 0x4, scoped, tag = 'scoped memory for tpu_custom_call.1']
    #allocation8 [shape = 'u8[16384]{0}', space=vmem, size = 0x4000, scoped, tag = 'input window, operand 5, single buffered']
    #allocation9 [shape = 'u8[8192]{0}', space=vmem, size = 0x2000, scoped, tag = 'output window, operand 0, single buffered']
    %12 = vsyncpa [#allocation4], 0
    %13 = vsyncpa [#allocation7], 0
    %14 = vsyncpa [#allocation5], 0
    // Predicated region
    $region2: #{tpu_custom_call.1} parent=1 // pred_check
      _
    $region3: #{tpu_custom_call.1} parent=1 // pred_check_branch
      %16 = sbr.rel (0) target = $region5
    $region4: #{tpu_custom_call.1} parent=1 // pred_region
      %s18 = ssub.s32 256, 256
      %19 = vsyncadd [#allocation4], %s18
      %s20 = sshll.u32 [#allocation3], 4
      %s21 = int_to_ptr.vmem [resolvable:$true] %s20
      %26 = dma.hbm_to_vmem [thread:$0]  %s0, 256, %s21, [#allocation4], 128, 128, 8
    $region5: #{tpu_custom_call.1} parent=1 // pred_fallthru
      _
    // Predicated region
    $region6: #{tpu_custom_call.1} parent=1 // pred_check
      _
    $region7: #{tpu_custom_call.1} parent=1 // pred_check_branch
      %28 = sbr.rel (0) target = $region9
    $region8: #{tpu_custom_call.1} parent=1 // pred_region
      %s30 = ssub.s32 512, 512
      %31 = vsyncadd [#allocation7], %s30
      %s32 = sshll.u32 [#allocation6], 4
      %s33 = int_to_ptr.vmem [resolvable:$true] %s32
      %38 = dma.hbm_to_vmem [thread:$0]  %s1, 512, %s33, [#allocation7], 128, 128, 8
    $region9: #{tpu_custom_call.1} parent=1 // pred_fallthru
      _
    // Predicated region
    $region10: #{tpu_custom_call.1} parent=1 // pred_check
      _
    $region11: #{tpu_custom_call.1} parent=1 // pred_check_branch
      %40 = sbr.rel (0) target = $region13
    $region12: #{tpu_custom_call.1} parent=1 // pred_region
      _
    $region13: #{tpu_custom_call.1} parent=1 // pred_fallthru
      _
    // Predicated region
    $region14: #{tpu_custom_call.1} parent=1 // pred_check
      _
    $region15: #{tpu_custom_call.1} parent=1 // pred_check_branch
      %42 = sbr.rel (0) target = $region17
    $region16: #{tpu_custom_call.1} parent=1 // pred_region
      _
    $region17: #{tpu_custom_call.1} parent=1 // pred_fallthru
      _
    // Predicated region
    $region18: #{tpu_custom_call.1} parent=1 // pred_check
      _
    $region19: #{tpu_custom_call.1} parent=1 // pred_check_branch
      %44 = sbr.rel (0) target = $region21
    $region20: #{tpu_custom_call.1} parent=1 // pred_region
      _
    $region21: #{tpu_custom_call.1} parent=1 // pred_fallthru
      _
    // Predicated region
    $region22: #{tpu_custom_call.1} parent=1 // pred_check
      _
    $region23: #{tpu_custom_call.1} parent=1 // pred_check_branch
      %46 = sbr.rel (0) target = $region25
    $region24: #{tpu_custom_call.1} parent=1 // pred_region
      %s48 = ssub.s32 512, 512
      %49 = vsyncadd [#allocation7], %s48
      %s50 = sshll.u32 [#allocation8], 4
      %s51 = int_to_ptr.vmem [resolvable:$true] %s50
      %56 = dma.hbm_to_vmem [thread:$0]  %s5, 512, %s51, [#allocation7], 128, 128, 8
    $region25: #{tpu_custom_call.1} parent=1 // pred_fallthru
      _
    // Predicated region
    $region26: #{tpu_custom_call.1} parent=1 // pred_check
      _
    $region27: #{tpu_custom_call.1} parent=1 // pred_check_branch
      %58 = sbr.rel (0) target = $region29
    $region28: #{tpu_custom_call.1} parent=1 // pred_region
      _
    $region29: #{tpu_custom_call.1} parent=1 // pred_fallthru
      _
    // Predicated region
    $region30: #{tpu_custom_call.1} parent=1 // pred_check
      _
    $region31: #{tpu_custom_call.1} parent=1 // pred_check_branch
      %60 = sbr.rel (0) target = $region33
    $region32: #{tpu_custom_call.1} parent=1 // pred_region
      %61 = dma.done [#allocation4], 256
    $region33: #{tpu_custom_call.1} parent=1 // pred_fallthru
      _
    // Predicated region
    $region34: #{tpu_custom_call.1} parent=1 // pred_check
      _
    $region35: #{tpu_custom_call.1} parent=1 // pred_check_branch
      %63 = sbr.rel (0) target = $region37
    $region36: #{tpu_custom_call.1} parent=1 // pred_region
      %64 = dma.done [#allocation7], 512
    $region37: #{tpu_custom_call.1} parent=1 // pred_fallthru
      _
    // Predicated region
    $region38: #{tpu_custom_call.1} parent=1 // pred_check
      _
    $region39: #{tpu_custom_call.1} parent=1 // pred_check_branch
      %66 = sbr.rel (0) target = $region41
    $region40: #{tpu_custom_call.1} parent=1 // pred_region
      %67 = dma.done [#allocation7], 512
    $region41: #{tpu_custom_call.1} parent=1 // pred_fallthru
      _
    %p68 = scmp.eq.s32.totalorder 0, 0
    // Predicated region
    $region42: #{tpu_custom_call.1} parent=1 // pred_check
      %p69 = pneg %p68
    $region43: #{tpu_custom_call.1} parent=1 // pred_check_branch
      %71 = sbr.rel (%p69) target = $region45
    $region44: #{tpu_custom_call.1} parent=1 // pred_region
      %v72 = vld [vmem:[#allocation3] sm:$0xff]
      %v73 = vld [vmem:[#allocation3 + $0x8] sm:$0xff]
      %v74 = vld [vmem:[#allocation6] sm:$0xff]
      %v75 = vld [vmem:[#allocation6 + $0x8] sm:$0xff]
      %v76 = vld [vmem:[#allocation6 + $0x10] sm:$0xff]
      %v77 = vld [vmem:[#allocation6 + $0x18] sm:$0xff]
      %v78 = vld [vmem:[%s2] sm:$0x1]
      %v80 = vlaneseq
      %v81 = vshrl.u32 %v80, 7
      %v82 = vsub.s32 0, %v81
      %v83 = vrot.slane %v78, %v82
      %vm85 = vcmask 261120
      %v87 = vsel %vm85, %v72, 0
      %v90 = vsel %vm85, %v73, 0
      %92 = vmatprep.subr.mxu0 0.0
      %93 = vmatpush1.msra.mxu0 0.0
      %94 = vmatprep.subr.mxu0 0.0
      %95 = vmatpush1.msra.mxu0 0.0
      %96 = vmatprep.subr.mxu0 0.0
      %97 = vmatpush1.msra.mxu0 0.0
      %98 = vmatprep.subr.mxu0 0.0
      %99 = vmatpush1.msra.mxu0 0.0
      %100 = vmatprep.subr.mxu0 0.0
      %101 = vmatpush1.msra.mxu0 0.0
      %102 = vmatprep.subr.mxu0 0.0
      %103 = vmatpush1.msra.mxu0 0.0
      %104 = vmatprep.subr.mxu0 0.0
      %105 = vmatpush1.msra.mxu0 0.0
      %106 = vmatprep.subr.mxu0 0.0
      %107 = vmatpush1.msra.mxu0 0.0
      %108 = vmatprep.subr.mxu0 0.0
      %109 = vmatpush1.msra.mxu0 0.0
      %110 = vmatprep.subr.mxu0 0.0
      %111 = vmatpush1.msra.mxu0 0.0
      %112 = vmatprep.subr.mxu0 0.0
      %113 = vmatpush1.msra.mxu0 0.0
      %114 = vmatprep.subr.mxu0 0.0
      %115 = vmatpush1.msra.mxu0 0.0
      %116 = vmatprep.subr.mxu0 0.0
      %117 = vmatpush1.msra.mxu0 %v77
      %118 = vmatprep.subr.mxu0 0.0
      %119 = vmatpush1.msra.mxu0 %v76
      %120 = vmatprep.subr.mxu0 0.0
      %121 = vmatpush1.msra.mxu0 %v75
      %122 = vmatprep.subr.mxu0 0.0
      %123 = vmatpush1.msra.mxu0 %v74
      %124 = vmatprep.subr.mxu0 0.0
      %125 = vmatpush2.msra.mxu0 0.0
      %126 = vmatprep.subr.mxu0 0.0
      %127 = vmatpush2.msra.mxu0 0.0
      %128 = vmatprep.subr.mxu0 0.0
      %129 = vmatpush2.msra.mxu0 0.0
      %130 = vmatprep.subr.mxu0 0.0
      %131 = vmatpush2.msra.mxu0 0.0
      %132 = vmatprep.subr.mxu0 0.0
      %133 = vmatpush2.msra.mxu0 0.0
      %134 = vmatprep.subr.mxu0 0.0
      %135 = vmatpush2.msra.mxu0 0.0
      %136 = vmatprep.subr.mxu0 0.0
      %137 = vmatpush2.msra.mxu0 0.0
      %138 = vmatprep.subr.mxu0 0.0
      %139 = vmatpush2.msra.mxu0 0.0
      %140 = vmatprep.subr.mxu0 0.0
      %141 = vmatpush2.msra.mxu0 0.0
      %142 = vmatprep.subr.mxu0 0.0
      %143 = vmatpush2.msra.mxu0 0.0
      %144 = vmatprep.subr.mxu0 0.0
      %145 = vmatpush2.msra.mxu0 0.0
      %146 = vmatprep.subr.mxu0 0.0
      %147 = vmatpush2.msra.mxu0 0.0
      %148 = vmatprep.subr.mxu0 0.0
      %149 = vmatpush2.msra.mxu0 0.0
      %150 = vmatprep.subr.mxu0 0.0
      %151 = vmatpush2.msra.mxu0 0.0
      %152 = vmatprep.subr.mxu0 0.0
      %153 = vmatpush2.msra.mxu0 0.0
      %154 = vmatprep.subr.mxu0 0.0
      %155 = vmatpush2.msra.mxu0 0.0
      %156 = vmatprep.mubr.f32.mxu0 0.0
      %157 = vmatmul.mubr.f32.gmra.mxu0 %v87
      %v158 = vpop.f32.mrf.mxu0
      %v159 = vadd.f32 %v83, %v158
      %v160 = vpop.f32.mrf.mxu0
      %161 = vmatprep.mubr.f32.mxu0 0.0
      %162 = vmatmul.mubr.f32.gmra.mxu0 %v90
      %v163 = vpop.f32.mrf.mxu0
      %v164 = vadd.f32 %v83, %v163
      %v165 = vpop.f32.mrf.mxu0
      %166 = vdwg.mxu0
      %v167 = vmul.f32 %v159, 0.5
      %v168 = vmul.f32 %v164, 0.5
      %v169 = vrcp.pop 1.4142135
      %v170 = vmul.f32 %v159, %v169
      %v171 = vmul.f32 %v164, %v169
      %v172 = verf.f32.pop %v170
      %v173 = verf.f32.pop %v171
      %v174 = vadd.f32 %v172, 1.0
      %v175 = vadd.f32 %v173, 1.0
      %v176 = vmul.f32 %v167, %v174
      %v177 = vmul.f32 %v168, %v175
      %v178 = vsel %vm85, %v176, 0.0
      %179 = vadd.xlane.f32.xlu0 %v178
      %v180 = vpop.xlane.xlu0 %179
      %v181 = vsel %vm85, %v177, 0.0
      %182 = vadd.xlane.f32.xlu0 %v181
      %v183 = vpop.xlane.xlu0 %182
      %v184 = vrcp.pop 32.0
      %v185 = vmul.f32 %v180, %v184
      %v186 = vmul.f32 %v183, %v184
      %v187 = vsub.f32 %v176, %v185
      %v188 = vsub.f32 %v177, %v186
      %v189 = vmul.f32 %v187, %v187
      %v190 = vmul.f32 %v188, %v188
      %v191 = vsel %vm85, %v189, 0.0
      %192 = vadd.xlane.f32.xlu0 %v191
      %v193 = vpop.xlane.xlu0 %192
      %v194 = vsel %vm85, %v190, 0.0
      %195 = vadd.xlane.f32.xlu0 %v194
      %v196 = vpop.xlane.xlu0 %195
      %v197 = vmul.f32 %v193, %v184
      %v198 = vmul.f32 %v196, %v184
      %v199 = vadd.f32 %v197, 1e-12
      %v200 = vadd.f32 %v198, 1e-12
      %v201 = vrsqrt.pop %v199
      %v202 = vrsqrt.pop %v200
      %v203 = vmul.f32 %v187, %v201
      %v204 = vmul.f32 %v188, %v202
      %v205 = vld [vmem:[%s3] sm:$0x1]
      %v207 = vlaneseq
      %v208 = vshrl.u32 %v207, 7
      %v209 = vsub.s32 0, %v208
      %v210 = vrot.slane %v205, %v209
      %v212 = vmul.f32 %v203, %v210
      %v213 = vmul.f32 %v204, %v210
      %v214 = vld [vmem:[%s4] sm:$0x1]
      %v216 = vlaneseq
      %v217 = vshrl.u32 %v216, 7
      %v218 = vsub.s32 0, %v217
      %v219 = vrot.slane %v214, %v218
      %v221 = vadd.f32 %v212, %v219
      %v222 = vadd.f32 %v213, %v219
      %223 = vst.msk [vmem:[#allocation2] sm:$0xff] %vm85, %v221
      %224 = vst.msk [vmem:[#allocation2 + $0x8] sm:$0xff] %vm85, %v222
    $region45: #{tpu_custom_call.1} parent=1 // pred_fallthru
      _
    %v225 = vld [vmem:[#allocation2] sm:$0xff]
    %v226 = vld [vmem:[#allocation2 + $0x8] sm:$0xff]
    %v227 = vld [vmem:[#allocation8] sm:$0xff]
    %v228 = vld [vmem:[#allocation8 + $0x8] sm:$0xff]
    %v229 = vld [vmem:[#allocation8 + $0x10] sm:$0xff]
    %v230 = vld [vmem:[#allocation8 + $0x18] sm:$0xff]
    %v231 = vld [vmem:[%s6] sm:$0x1]
    %v233 = vlaneseq
    %v234 = vshrl.u32 %v233, 7
    %v235 = vsub.s32 0, %v234
    %v236 = vrot.slane %v231, %v235
    %vm238 = vcmask 261120
    %v240 = vsel %vm238, %v225, 0
    %v243 = vsel %vm238, %v226, 0
    %245 = vmatprep.subr.mxu0 0.0
    %246 = vmatpush1.msra.mxu0 0.0
    %247 = vmatprep.subr.mxu0 0.0
    %248 = vmatpush1.msra.mxu0 0.0
    %249 = vmatprep.subr.mxu0 0.0
    %250 = vmatpush1.msra.mxu0 0.0
    %251 = vmatprep.subr.mxu0 0.0
    %252 = vmatpush1.msra.mxu0 0.0
    %253 = vmatprep.subr.mxu0 0.0
    %254 = vmatpush1.msra.mxu0 0.0
    %255 = vmatprep.subr.mxu0 0.0
    %256 = vmatpush1.msra.mxu0 0.0
    %257 = vmatprep.subr.mxu0 0.0
    %258 = vmatpush1.msra.mxu0 0.0
    %259 = vmatprep.subr.mxu0 0.0
    %260 = vmatpush1.msra.mxu0 0.0
    %261 = vmatprep.subr.mxu0 0.0
    %262 = vmatpush1.msra.mxu0 0.0
    %263 = vmatprep.subr.mxu0 0.0
    %264 = vmatpush1.msra.mxu0 0.0
    %265 = vmatprep.subr.mxu0 0.0
    %266 = vmatpush1.msra.mxu0 0.0
    %267 = vmatprep.subr.mxu0 0.0
    %268 = vmatpush1.msra.mxu0 0.0
    %269 = vmatprep.subr.mxu0 0.0
    %270 = vmatpush1.msra.mxu0 %v230
    %271 = vmatprep.subr.mxu0 0.0
    %272 = vmatpush1.msra.mxu0 %v229
    %273 = vmatprep.subr.mxu0 0.0
    %274 = vmatpush1.msra.mxu0 %v228
    %275 = vmatprep.subr.mxu0 0.0
    %276 = vmatpush1.msra.mxu0 %v227
    %277 = vmatprep.subr.mxu0 0.0
    %278 = vmatpush2.msra.mxu0 0.0
    %279 = vmatprep.subr.mxu0 0.0
    %280 = vmatpush2.msra.mxu0 0.0
    %281 = vmatprep.subr.mxu0 0.0
    %282 = vmatpush2.msra.mxu0 0.0
    %283 = vmatprep.subr.mxu0 0.0
    %284 = vmatpush2.msra.mxu0 0.0
    %285 = vmatprep.subr.mxu0 0.0
    %286 = vmatpush2.msra.mxu0 0.0
    %287 = vmatprep.subr.mxu0 0.0
    %288 = vmatpush2.msra.mxu0 0.0
    %289 = vmatprep.subr.mxu0 0.0
    %290 = vmatpush2.msra.mxu0 0.0
    %291 = vmatprep.subr.mxu0 0.0
    %292 = vmatpush2.msra.mxu0 0.0
    %293 = vmatprep.subr.mxu0 0.0
    %294 = vmatpush2.msra.mxu0 0.0
    %295 = vmatprep.subr.mxu0 0.0
    %296 = vmatpush2.msra.mxu0 0.0
    %297 = vmatprep.subr.mxu0 0.0
    %298 = vmatpush2.msra.mxu0 0.0
    %299 = vmatprep.subr.mxu0 0.0
    %300 = vmatpush2.msra.mxu0 0.0
    %301 = vmatprep.subr.mxu0 0.0
    %302 = vmatpush2.msra.mxu0 0.0
    %303 = vmatprep.subr.mxu0 0.0
    %304 = vmatpush2.msra.mxu0 0.0
    %305 = vmatprep.subr.mxu0 0.0
    %306 = vmatpush2.msra.mxu0 0.0
    %307 = vmatprep.subr.mxu0 0.0
    %308 = vmatpush2.msra.mxu0 0.0
    %309 = vmatprep.mubr.f32.mxu0 0.0
    %310 = vmatmul.mubr.f32.gmra.mxu0 %v240
    %v311 = vpop.f32.mrf.mxu0
    %v312 = vadd.f32 %v236, %v311
    %v313 = vpop.f32.mrf.mxu0
    %314 = vmatprep.mubr.f32.mxu0 0.0
    %315 = vmatmul.mubr.f32.gmra.mxu0 %v243
    %v316 = vpop.f32.mrf.mxu0
    %v317 = vadd.f32 %v236, %v316
    %v318 = vpop.f32.mrf.mxu0
    %319 = vdwg.mxu0
    %320 = vst [vmem:[#allocation9] sm:$0xff] %v312
    %321 = vst [vmem:[#allocation9 + $0x8] sm:$0xff] %v317
    // Predicated region
    $region46: #{tpu_custom_call.1} parent=1 // pred_check
      _
    $region47: #{tpu_custom_call.1} parent=1 // pred_check_branch
      %323 = sbr.rel (0) target = $region49
    $region48: #{tpu_custom_call.1} parent=1 // pred_region
      %s325 = ssub.s32 256, 256
      %326 = vsyncadd [#allocation5], %s325
      %s327 = sshll.u32 [#allocation9], 4
      %s328 = int_to_ptr.vmem [resolvable:$true] %s327
      %333 = dma.vmem_to_hbm [thread:$0]  %s328, 256, %s7, [#allocation5], 128, 128, 8
    $region49: #{tpu_custom_call.1} parent=1 // pred_fallthru
      _
    // Predicated region
    $region50: #{tpu_custom_call.1} parent=1 // pred_check
      _
    $region51: #{tpu_custom_call.1} parent=1 // pred_check_branch
      %335 = sbr.rel (0) target = $region53
    $region52: #{tpu_custom_call.1} parent=1 // pred_region
      %336 = dma.done [#allocation5], 256
    $region53: #{tpu_custom_call.1} parent=1 // pred_fallthru
      _
    %337 = vsyncpa [#allocation4], 1
    %338 = vsyncpa [#allocation7], 1
    %339 = vsyncpa [#allocation5], 1

// kernel: tpu_custom_call.1
$region0: #{tpu_custom_call.1}
  #allocation0 [shape = 'u32[]', space=smem, size = 0x4, offset = 0x4, fixed_abs, tag = 'smem constant byte address 0x4 - core index']
  #allocation1 [shape = 'u32[144,128]{1,0:T(1,128)}', space=vmem, size = 0x12000, scoped, tag = 'internal scratch']
  #allocation2 [shape = 'f32[16,32]{1,0:T(8,128)}', space=vmem, size = 0x2000, scoped, tag = 'scratch operand']
  %s0 = inlined_call_operand.hbm [shape: f32[16,32], index: 0, kind: input, shape index: {}]
  %s1 = inlined_call_operand.hbm [shape: f32[32,32], index: 1, kind: input, shape index: {}]
  %s2 = inlined_call_operand.vmem [shape: f32[1,32], index: 2, kind: input, shape index: {}]
  %s3 = inlined_call_operand.vmem [shape: f32[1,32], index: 3, kind: input, shape index: {}]
  %s4 = inlined_call_operand.vmem [shape: f32[1,32], index: 4, kind: input, shape index: {}]
  %s5 = inlined_call_operand.hbm [shape: f32[32,128], index: 5, kind: input, shape index: {}]
  %s6 = inlined_call_operand.vmem [shape: f32[1,128], index: 6, kind: input, shape index: {}]
  %s7 = inlined_call_operand.hbm [shape: f32[16,128], index: 7, kind: output, shape index: {}]
  %s8 = sld [smem:[#allocation0]]
  $region54: #{tpu_custom_call.1} parent=0
    _
  %s10 = ssub.s32 1, %s8
  %s11 = scalar_select 0, %s10, %s8
  $region1: #{tpu_custom_call.1} parent=0
    #allocation3 [shape = 'u8[8192]{0}', space=vmem, size = 0x2000, scoped, tag = 'input window, operand 0, single buffered']
    #allocation4 [shape = 's32[1]{0}', space=sflag, size = 0x4, scoped, tag = 'scoped memory for tpu_custom_call.1']
    #allocation5 [shape = 's32[1]{0}', space=sflag, size = 0x4, scoped, tag = 'scoped memory for tpu_custom_call.1']
    #allocation6 [shape = 'u8[16384]{0}', space=vmem, size = 0x4000, scoped, tag = 'input window, operand 1, single buffered']
    #allocation7 [shape = 's32[1]{0}', space=sflag, size = 0x4, scoped, tag = 'scoped memory for tpu_custom_call.1']
    #allocation8 [shape = 'u8[16384]{0}', space=vmem, size = 0x4000, scoped, tag = 'input window, operand 5, single buffered']
    #allocation9 [shape = 'u8[8192]{0}', space=vmem, size = 0x2000, scoped, tag = 'output window, operand 0, single buffered']
    %12 = vsyncpa [#allocation4], 0
    %13 = vsyncpa [#allocation7], 0
    %14 = vsyncpa [#allocation5], 0
    // Predicated region
    $region2: #{tpu_custom_call.1} parent=1 // pred_check
      _
    $region3: #{tpu_custom_call.1} parent=1 // pred_check_branch
      %16 = sbr.rel (0) target = $region5
    $region4: #{tpu_custom_call.1} parent=1 // pred_region
      %s18 = ssub.s32 256, 256
      %19 = vsyncadd [#allocation4], %s18
      %s20 = sshll.u32 [#allocation3], 4
      %s21 = int_to_ptr.vmem [resolvable:$true] %s20
      %26 = dma.hbm_to_vmem [thread:$0]  %s0, 256, %s21, [#allocation4], 128, 128, 8
    $region5: #{tpu_custom_call.1} parent=1 // pred_fallthru
      _
    // Predicated region
    $region6: #{tpu_custom_call.1} parent=1 // pred_check
      _
    $region7: #{tpu_custom_call.1} parent=1 // pred_check_branch
      %28 = sbr.rel (0) target = $region9
    $region8: #{tpu_custom_call.1} parent=1 // pred_region
      %s30 = ssub.s32 512, 512
      %31 = vsyncadd [#allocation7], %s30
      %s32 = sshll.u32 [#allocation6], 4
      %s33 = int_to_ptr.vmem [resolvable:$true] %s32
      %38 = dma.hbm_to_vmem [thread:$0]  %s1, 512, %s33, [#allocation7], 128, 128, 8
    $region9: #{tpu_custom_call.1} parent=1 // pred_fallthru
      _
    // Predicated region
    $region10: #{tpu_custom_call.1} parent=1 // pred_check
      _
    $region11: #{tpu_custom_call.1} parent=1 // pred_check_branch
      %40 = sbr.rel (0) target = $region13
    $region12: #{tpu_custom_call.1} parent=1 // pred_region
      _
    $region13: #{tpu_custom_call.1} parent=1 // pred_fallthru
      _
    // Predicated region
    $region14: #{tpu_custom_call.1} parent=1 // pred_check
      _
    $region15: #{tpu_custom_call.1} parent=1 // pred_check_branch
      %42 = sbr.rel (0) target = $region17
    $region16: #{tpu_custom_call.1} parent=1 // pred_region
      _
    $region17: #{tpu_custom_call.1} parent=1 // pred_fallthru
      _
    // Predicated region
    $region18: #{tpu_custom_call.1} parent=1 // pred_check
      _
    $region19: #{tpu_custom_call.1} parent=1 // pred_check_branch
      %44 = sbr.rel (0) target = $region21
    $region20: #{tpu_custom_call.1} parent=1 // pred_region
      _
    $region21: #{tpu_custom_call.1} parent=1 // pred_fallthru
      _
    // Predicated region
    $region22: #{tpu_custom_call.1} parent=1 // pred_check
      _
    $region23: #{tpu_custom_call.1} parent=1 // pred_check_branch
      %46 = sbr.rel (0) target = $region25
    $region24: #{tpu_custom_call.1} parent=1 // pred_region
      %s48 = ssub.s32 512, 512
      %49 = vsyncadd [#allocation7], %s48
      %s50 = sshll.u32 [#allocation8], 4
      %s51 = int_to_ptr.vmem [resolvable:$true] %s50
      %56 = dma.hbm_to_vmem [thread:$0]  %s5, 512, %s51, [#allocation7], 128, 128, 8
    $region25: #{tpu_custom_call.1} parent=1 // pred_fallthru
      _
    // Predicated region
    $region26: #{tpu_custom_call.1} parent=1 // pred_check
      _
    $region27: #{tpu_custom_call.1} parent=1 // pred_check_branch
      %58 = sbr.rel (0) target = $region29
    $region28: #{tpu_custom_call.1} parent=1 // pred_region
      _
    $region29: #{tpu_custom_call.1} parent=1 // pred_fallthru
      _
    // Predicated region
    $region30: #{tpu_custom_call.1} parent=1 // pred_check
      _
    $region31: #{tpu_custom_call.1} parent=1 // pred_check_branch
      %60 = sbr.rel (0) target = $region33
    $region32: #{tpu_custom_call.1} parent=1 // pred_region
      %61 = dma.done [#allocation4], 256
    $region33: #{tpu_custom_call.1} parent=1 // pred_fallthru
      _
    // Predicated region
    $region34: #{tpu_custom_call.1} parent=1 // pred_check
      _
    $region35: #{tpu_custom_call.1} parent=1 // pred_check_branch
      %63 = sbr.rel (0) target = $region37
    $region36: #{tpu_custom_call.1} parent=1 // pred_region
      %64 = dma.done [#allocation7], 512
    $region37: #{tpu_custom_call.1} parent=1 // pred_fallthru
      _
    // Predicated region
    $region38: #{tpu_custom_call.1} parent=1 // pred_check
      _
    $region39: #{tpu_custom_call.1} parent=1 // pred_check_branch
      %66 = sbr.rel (0) target = $region41
    $region40: #{tpu_custom_call.1} parent=1 // pred_region
      %67 = dma.done [#allocation7], 512
    $region41: #{tpu_custom_call.1} parent=1 // pred_fallthru
      _
    %p68 = scmp.eq.s32.totalorder 0, 0
    // Predicated region
    $region42: #{tpu_custom_call.1} parent=1 // pred_check
      %p69 = pneg %p68
    $region43: #{tpu_custom_call.1} parent=1 // pred_check_branch
      %71 = sbr.rel (%p69) target = $region45
    $region44: #{tpu_custom_call.1} parent=1 // pred_region
      %v72 = vld [vmem:[#allocation3] sm:$0xff]
      %v73 = vld [vmem:[#allocation3 + $0x8] sm:$0xff]
      %v74 = vld [vmem:[#allocation6] sm:$0xff]
      %v75 = vld [vmem:[#allocation6 + $0x8] sm:$0xff]
      %v76 = vld [vmem:[#allocation6 + $0x10] sm:$0xff]
      %v77 = vld [vmem:[#allocation6 + $0x18] sm:$0xff]
      %v78 = vld [vmem:[%s2] sm:$0x1]
      %v80 = vlaneseq
      %v81 = vshrl.u32 %v80, 7
      %v82 = vsub.s32 0, %v81
      %v83 = vrot.slane %v78, %v82
      %vm85 = vcmask 261120
      %v87 = vsel %vm85, %v72, 0
      %v90 = vsel %vm85, %v73, 0
      %92 = vmatprep.subr.mxu0 0.0
      %93 = vmatpush1.msra.mxu0 0.0
      %94 = vmatprep.subr.mxu0 0.0
      %95 = vmatpush1.msra.mxu0 0.0
      %96 = vmatprep.subr.mxu0 0.0
      %97 = vmatpush1.msra.mxu0 0.0
      %98 = vmatprep.subr.mxu0 0.0
      %99 = vmatpush1.msra.mxu0 0.0
      %100 = vmatprep.subr.mxu0 0.0
      %101 = vmatpush1.msra.mxu0 0.0
      %102 = vmatprep.subr.mxu0 0.0
      %103 = vmatpush1.msra.mxu0 0.0
      %104 = vmatprep.subr.mxu0 0.0
      %105 = vmatpush1.msra.mxu0 0.0
      %106 = vmatprep.subr.mxu0 0.0
      %107 = vmatpush1.msra.mxu0 0.0
      %108 = vmatprep.subr.mxu0 0.0
      %109 = vmatpush1.msra.mxu0 0.0
      %110 = vmatprep.subr.mxu0 0.0
      %111 = vmatpush1.msra.mxu0 0.0
      %112 = vmatprep.subr.mxu0 0.0
      %113 = vmatpush1.msra.mxu0 0.0
      %114 = vmatprep.subr.mxu0 0.0
      %115 = vmatpush1.msra.mxu0 0.0
      %116 = vmatprep.subr.mxu0 0.0
      %117 = vmatpush1.msra.mxu0 %v77
      %118 = vmatprep.subr.mxu0 0.0
      %119 = vmatpush1.msra.mxu0 %v76
      %120 = vmatprep.subr.mxu0 0.0
      %121 = vmatpush1.msra.mxu0 %v75
      %122 = vmatprep.subr.mxu0 0.0
      %123 = vmatpush1.msra.mxu0 %v74
      %124 = vmatprep.subr.mxu0 0.0
      %125 = vmatpush2.msra.mxu0 0.0
      %126 = vmatprep.subr.mxu0 0.0
      %127 = vmatpush2.msra.mxu0 0.0
      %128 = vmatprep.subr.mxu0 0.0
      %129 = vmatpush2.msra.mxu0 0.0
      %130 = vmatprep.subr.mxu0 0.0
      %131 = vmatpush2.msra.mxu0 0.0
      %132 = vmatprep.subr.mxu0 0.0
      %133 = vmatpush2.msra.mxu0 0.0
      %134 = vmatprep.subr.mxu0 0.0
      %135 = vmatpush2.msra.mxu0 0.0
      %136 = vmatprep.subr.mxu0 0.0
      %137 = vmatpush2.msra.mxu0 0.0
      %138 = vmatprep.subr.mxu0 0.0
      %139 = vmatpush2.msra.mxu0 0.0
      %140 = vmatprep.subr.mxu0 0.0
      %141 = vmatpush2.msra.mxu0 0.0
      %142 = vmatprep.subr.mxu0 0.0
      %143 = vmatpush2.msra.mxu0 0.0
      %144 = vmatprep.subr.mxu0 0.0
      %145 = vmatpush2.msra.mxu0 0.0
      %146 = vmatprep.subr.mxu0 0.0
      %147 = vmatpush2.msra.mxu0 0.0
      %148 = vmatprep.subr.mxu0 0.0
      %149 = vmatpush2.msra.mxu0 0.0
      %150 = vmatprep.subr.mxu0 0.0
      %151 = vmatpush2.msra.mxu0 0.0
      %152 = vmatprep.subr.mxu0 0.0
      %153 = vmatpush2.msra.mxu0 0.0
      %154 = vmatprep.subr.mxu0 0.0
      %155 = vmatpush2.msra.mxu0 0.0
      %156 = vmatprep.mubr.f32.mxu0 0.0
      %157 = vmatmul.mubr.f32.gmra.mxu0 %v87
      %v158 = vpop.f32.mrf.mxu0
      %v159 = vadd.f32 %v83, %v158
      %v160 = vpop.f32.mrf.mxu0
      %161 = vmatprep.mubr.f32.mxu0 0.0
      %162 = vmatmul.mubr.f32.gmra.mxu0 %v90
      %v163 = vpop.f32.mrf.mxu0
      %v164 = vadd.f32 %v83, %v163
      %v165 = vpop.f32.mrf.mxu0
      %166 = vdwg.mxu0
      %v167 = vmul.f32 %v159, 0.5
      %v168 = vmul.f32 %v164, 0.5
      %v169 = vrcp.pop 1.4142135
      %v170 = vmul.f32 %v159, %v169
      %v171 = vmul.f32 %v164, %v169
      %v172 = verf.f32.pop %v170
      %v173 = verf.f32.pop %v171
      %v174 = vadd.f32 %v172, 1.0
      %v175 = vadd.f32 %v173, 1.0
      %v176 = vmul.f32 %v167, %v174
      %v177 = vmul.f32 %v168, %v175
      %v178 = vsel %vm85, %v176, 0.0
      %179 = vadd.xlane.f32.xlu0 %v178
      %v180 = vpop.xlane.xlu0 %179
      %v181 = vsel %vm85, %v177, 0.0
      %182 = vadd.xlane.f32.xlu0 %v181
      %v183 = vpop.xlane.xlu0 %182
      %v184 = vrcp.pop 32.0
      %v185 = vmul.f32 %v180, %v184
      %v186 = vmul.f32 %v183, %v184
      %v187 = vsub.f32 %v176, %v185
      %v188 = vsub.f32 %v177, %v186
      %v189 = vmul.f32 %v187, %v187
      %v190 = vmul.f32 %v188, %v188
      %v191 = vsel %vm85, %v189, 0.0
      %192 = vadd.xlane.f32.xlu0 %v191
      %v193 = vpop.xlane.xlu0 %192
      %v194 = vsel %vm85, %v190, 0.0
      %195 = vadd.xlane.f32.xlu0 %v194
      %v196 = vpop.xlane.xlu0 %195
      %v197 = vmul.f32 %v193, %v184
      %v198 = vmul.f32 %v196, %v184
      %v199 = vadd.f32 %v197, 1e-12
      %v200 = vadd.f32 %v198, 1e-12
      %v201 = vrsqrt.pop %v199
      %v202 = vrsqrt.pop %v200
      %v203 = vmul.f32 %v187, %v201
      %v204 = vmul.f32 %v188, %v202
      %v205 = vld [vmem:[%s3] sm:$0x1]
      %v207 = vlaneseq
      %v208 = vshrl.u32 %v207, 7
      %v209 = vsub.s32 0, %v208
      %v210 = vrot.slane %v205, %v209
      %v212 = vmul.f32 %v203, %v210
      %v213 = vmul.f32 %v204, %v210
      %v214 = vld [vmem:[%s4] sm:$0x1]
      %v216 = vlaneseq
      %v217 = vshrl.u32 %v216, 7
      %v218 = vsub.s32 0, %v217
      %v219 = vrot.slane %v214, %v218
      %v221 = vadd.f32 %v212, %v219
      %v222 = vadd.f32 %v213, %v219
      %223 = vst.msk [vmem:[#allocation2] sm:$0xff] %vm85, %v221
      %224 = vst.msk [vmem:[#allocation2 + $0x8] sm:$0xff] %vm85, %v222
    $region45: #{tpu_custom_call.1} parent=1 // pred_fallthru
      _
    %v225 = vld [vmem:[#allocation2] sm:$0xff]
    %v226 = vld [vmem:[#allocation2 + $0x8] sm:$0xff]
    %v227 = vld [vmem:[#allocation8] sm:$0xff]
    %v228 = vld [vmem:[#allocation8 + $0x8] sm:$0xff]
    %v229 = vld [vmem:[#allocation8 + $0x10] sm:$0xff]
    %v230 = vld [vmem:[#allocation8 + $0x18] sm:$0xff]
    %v231 = vld [vmem:[%s6] sm:$0x1]
    %v233 = vlaneseq
    %v234 = vshrl.u32 %v233, 7
    %v235 = vsub.s32 0, %v234
    %v236 = vrot.slane %v231, %v235
    %vm238 = vcmask 261120
    %v240 = vsel %vm238, %v225, 0
    %v243 = vsel %vm238, %v226, 0
    %245 = vmatprep.subr.mxu0 0.0
    %246 = vmatpush1.msra.mxu0 0.0
    %247 = vmatprep.subr.mxu0 0.0
    %248 = vmatpush1.msra.mxu0 0.0
    %249 = vmatprep.subr.mxu0 0.0
    %250 = vmatpush1.msra.mxu0 0.0
    %251 = vmatprep.subr.mxu0 0.0
    %252 = vmatpush1.msra.mxu0 0.0
    %253 = vmatprep.subr.mxu0 0.0
    %254 = vmatpush1.msra.mxu0 0.0
    %255 = vmatprep.subr.mxu0 0.0
    %256 = vmatpush1.msra.mxu0 0.0
    %257 = vmatprep.subr.mxu0 0.0
    %258 = vmatpush1.msra.mxu0 0.0
    %259 = vmatprep.subr.mxu0 0.0
    %260 = vmatpush1.msra.mxu0 0.0
    %261 = vmatprep.subr.mxu0 0.0
    %262 = vmatpush1.msra.mxu0 0.0
    %263 = vmatprep.subr.mxu0 0.0
    %264 = vmatpush1.msra.mxu0 0.0
    %265 = vmatprep.subr.mxu0 0.0
    %266 = vmatpush1.msra.mxu0 0.0
    %267 = vmatprep.subr.mxu0 0.0
    %268 = vmatpush1.msra.mxu0 0.0
    %269 = vmatprep.subr.mxu0 0.0
    %270 = vmatpush1.msra.mxu0 %v230
    %271 = vmatprep.subr.mxu0 0.0
    %272 = vmatpush1.msra.mxu0 %v229
    %273 = vmatprep.subr.mxu0 0.0
    %274 = vmatpush1.msra.mxu0 %v228
    %275 = vmatprep.subr.mxu0 0.0
    %276 = vmatpush1.msra.mxu0 %v227
    %277 = vmatprep.subr.mxu0 0.0
    %278 = vmatpush2.msra.mxu0 0.0
    %279 = vmatprep.subr.mxu0 0.0
    %280 = vmatpush2.msra.mxu0 0.0
    %281 = vmatprep.subr.mxu0 0.0
    %282 = vmatpush2.msra.mxu0 0.0
    %283 = vmatprep.subr.mxu0 0.0
    %284 = vmatpush2.msra.mxu0 0.0
    %285 = vmatprep.subr.mxu0 0.0
    %286 = vmatpush2.msra.mxu0 0.0
    %287 = vmatprep.subr.mxu0 0.0
    %288 = vmatpush2.msra.mxu0 0.0
    %289 = vmatprep.subr.mxu0 0.0
    %290 = vmatpush2.msra.mxu0 0.0
    %291 = vmatprep.subr.mxu0 0.0
    %292 = vmatpush2.msra.mxu0 0.0
    %293 = vmatprep.subr.mxu0 0.0
    %294 = vmatpush2.msra.mxu0 0.0
    %295 = vmatprep.subr.mxu0 0.0
    %296 = vmatpush2.msra.mxu0 0.0
    %297 = vmatprep.subr.mxu0 0.0
    %298 = vmatpush2.msra.mxu0 0.0
    %299 = vmatprep.subr.mxu0 0.0
    %300 = vmatpush2.msra.mxu0 0.0
    %301 = vmatprep.subr.mxu0 0.0
    %302 = vmatpush2.msra.mxu0 0.0
    %303 = vmatprep.subr.mxu0 0.0
    %304 = vmatpush2.msra.mxu0 0.0
    %305 = vmatprep.subr.mxu0 0.0
    %306 = vmatpush2.msra.mxu0 0.0
    %307 = vmatprep.subr.mxu0 0.0
    %308 = vmatpush2.msra.mxu0 0.0
    %309 = vmatprep.mubr.f32.mxu0 0.0
    %310 = vmatmul.mubr.f32.gmra.mxu0 %v240
    %v311 = vpop.f32.mrf.mxu0
    %v312 = vadd.f32 %v236, %v311
    %v313 = vpop.f32.mrf.mxu0
    %314 = vmatprep.mubr.f32.mxu0 0.0
    %315 = vmatmul.mubr.f32.gmra.mxu0 %v243
    %v316 = vpop.f32.mrf.mxu0
    %v317 = vadd.f32 %v236, %v316
    %v318 = vpop.f32.mrf.mxu0
    %319 = vdwg.mxu0
    %320 = vst [vmem:[#allocation9] sm:$0xff] %v312
    %321 = vst [vmem:[#allocation9 + $0x8] sm:$0xff] %v317
    // Predicated region
    $region46: #{tpu_custom_call.1} parent=1 // pred_check
      _
    $region47: #{tpu_custom_call.1} parent=1 // pred_check_branch
      %323 = sbr.rel (0) target = $region49
    $region48: #{tpu_custom_call.1} parent=1 // pred_region
      %s325 = ssub.s32 256, 256
      %326 = vsyncadd [#allocation5], %s325
      %s327 = sshll.u32 [#allocation9], 4
      %s328 = int_to_ptr.vmem [resolvable:$true] %s327
      %333 = dma.vmem_to_hbm [thread:$0]  %s328, 256, %s7, [#allocation5], 128, 128, 8
    $region49: #{tpu_custom_call.1} parent=1 // pred_fallthru
      _
    // Predicated region
    $region50: #{tpu_custom_call.1} parent=1 // pred_check
      _
    $region51: #{tpu_custom_call.1} parent=1 // pred_check_branch
      %335 = sbr.rel (0) target = $region53
    $region52: #{tpu_custom_call.1} parent=1 // pred_region
      %336 = dma.done [#allocation5], 256
    $region53: #{tpu_custom_call.1} parent=1 // pred_fallthru
      _
    %337 = vsyncpa [#allocation4], 1
    %338 = vsyncpa [#allocation7], 1
    %339 = vsyncpa [#allocation5], 1

</llo_original>
